<compile_context>
chip_gen: v6e
topology: v6e:2x2x1
jax: 0.10.0
libtpu: 0.0.40
codegen_flags: <defaults>
</compile_context>

<pallas_src>
import jax
import jax.numpy as jnp
from jax.experimental import pallas as pl
from jax.experimental.pallas import tpu as pltpu

D_IN, D_H, D_OUT = 10, 20, 4
MAX_TILE_B = 8192


def fused_affine_kernel(x_ref, w_ref, b_ref, o_ref):
    # y = x @ W_fused + b_fused : one MXU matmul with f32 accumulation; the
    # bias add rides in spare VALU slots under the DMA.
    acc = jnp.dot(x_ref[...], w_ref[...], preferred_element_type=jnp.float32)
    o_ref[...] = (acc + b_ref[...]).astype(o_ref.dtype)


def _round_up(n, m):
    return ((n + m - 1) // m) * m


def _choose_tile_b(batch):
    # Large tiles amortize the fixed per-grid-step cost.  For big batches keep
    # the grid >= 2 steps so v7x's two TensorCores both get work; cap at 8192
    # rows (x tile 320 KiB, out tile 128 KiB, double-buffered -> tiny VMEM).
    if batch >= 2048:
        return min(MAX_TILE_B, _round_up(pl.cdiv(batch, 2), 8))
    return _round_up(max(batch, 1), 8)


def fuse_params(params):
    """Fold fc1 -> fc2 -> output into a single affine map (no activations)."""
    w1, b1 = params["w1"], params["b1"]
    w2, b2 = params["w2"], params["b2"]
    w3, b3 = params["w3"], params["b3"]
    hp = jax.lax.Precision.HIGHEST
    w_fused = jnp.dot(jnp.dot(w1, w2, precision=hp), w3, precision=hp)            # (10, 4)
    b_fused = jnp.dot(jnp.dot(b1, w2, precision=hp) + b2, w3, precision=hp) + b3  # (1, 4)
    return w_fused, b_fused


@jax.jit
def net_forward_fused(x, w_fused, b_fused):
    """x: (B, 10) f32, w_fused: (10, 4) f32, b_fused: (1, 4) f32 -> (B, 4) f32."""
    batch = x.shape[0]
    tile_b = _choose_tile_b(batch)
    grid = (pl.cdiv(batch, tile_b),)   # ragged last block handled by Pallas

    return pl.pallas_call(
        fused_affine_kernel,
        out_shape=jax.ShapeDtypeStruct((batch, D_OUT), jnp.float32),
        grid=grid,
        in_specs=[
            pl.BlockSpec((tile_b, D_IN), lambda i: (i, 0)),   # x: tiled over batch
            pl.BlockSpec((D_IN, D_OUT), lambda i: (0, 0)),    # W_fused: VMEM-resident
            pl.BlockSpec((1, D_OUT), lambda i: (0, 0)),       # b_fused: VMEM-resident
        ],
        out_specs=pl.BlockSpec((tile_b, D_OUT), lambda i: (i, 0)),
        compiler_params=pltpu.CompilerParams(
            dimension_semantics=("parallel",),  # megacore sharding on v7x; no-op on v5e/v6e
        ),
    )(x, w_fused, b_fused)


def net_forward(x, params):
    """Convenience wrapper mirroring Net.forward.  For repeated inference,
    hoist fuse_params out of the per-call path (as done in __main__)."""
    w_fused, b_fused = fuse_params(params)
    return net_forward_fused(x, w_fused, b_fused)


def init_linear(key, fan_in, fan_out):
    # Mirror torch.nn.Linear default init: U(-1/sqrt(fan_in), 1/sqrt(fan_in)).
    # Stored as (in, out) so y = x @ W + b  ==  PyTorch's x @ W_t.T + b.
    kw, kb = jax.random.split(key)
    bound = 1.0 / jnp.sqrt(jnp.float32(fan_in))
    w = jax.random.uniform(kw, (fan_in, fan_out), jnp.float32, -bound, bound)
    b = jax.random.uniform(kb, (1, fan_out), jnp.float32, -bound, bound)
    return w, b


if __name__ == "__main__":
    key = jax.random.PRNGKey(0)
    k_x, k1, k2, k3 = jax.random.split(key, 4)

    w1, b1 = init_linear(k1, D_IN, D_H)
    w2, b2 = init_linear(k2, D_H, D_H)
    w3, b3 = init_linear(k3, D_H, D_OUT)
    params = dict(w1=w1, b1=b1, w2=w2, b2=b2, w3=w3, b3=b3)

    # Weight fusion done once per parameter set, outside the per-call path.
    w_fused, b_fused = fuse_params(params)

    # Small demo batch (exact block) plus a ragged batch (exercises the cdiv
    # grid / partial-block path).
    for B in (8, 300):
        x = jax.random.normal(k_x, (B, D_IN), jnp.float32)
        out = jax.block_until_ready(net_forward_fused(x, w_fused, b_fused))
        assert out.shape == (B, D_OUT)

        # Reference: original un-fused 3-layer f32 forward.
        ref = ((x @ w1 + b1) @ w2 + b2) @ w3 + b3
        assert jnp.allclose(out, ref, atol=2e-3, rtol=2e-3), float(
            jnp.max(jnp.abs(out - ref)))

    print("KERNEL_OK")
</pallas_src>

<mosaic_0001>
module attributes {stable_mosaic.version = 11 : i64} {
  func.func @fused_affine_kernel(%arg0: i32, %arg1: memref<8x10xf32, #tpu.memory_space<vmem>>, %arg2: memref<10x4xf32, #tpu.memory_space<vmem>>, %arg3: memref<1x4xf32, #tpu.memory_space<vmem>>, %arg4: memref<8x4xf32, #tpu.memory_space<vmem>>) attributes {dimension_semantics = [#tpu.dimension_semantics<parallel>], iteration_bounds = array<i64: 1>, scalar_prefetch = 0 : i64, scratch_operands = 0 : i64, tpu.core_type = #tpu.core_type<tc>, window_params = [{transform_indices = @transform_0, window_bounds = array<i64: 8, 10>}, {pipeline_mode = #tpu.pipeline_mode<synchronous>, transform_indices = @transform_1, window_bounds = array<i64: 10, 4>}, {pipeline_mode = #tpu.pipeline_mode<synchronous>, transform_indices = @transform_2, window_bounds = array<i64: 1, 4>}, {transform_indices = @transform_3, window_bounds = array<i64: 8, 4>}]} {
    %c0 = arith.constant 0 : index
    %c0_0 = arith.constant 0 : index
    %0 = vector.load %arg1[%c0, %c0_0] : memref<8x10xf32, #tpu.memory_space<vmem>>, vector<8x10xf32>
    %c0_1 = arith.constant 0 : index
    %c0_2 = arith.constant 0 : index
    %1 = vector.load %arg2[%c0_1, %c0_2] : memref<10x4xf32, #tpu.memory_space<vmem>>, vector<10x4xf32>
    %cst = arith.constant dense<0.000000e+00> : vector<8x4xf32>
    %2 = tpu.matmul %0, %1, %cst {dimension_numbers = #tpu.dot_dimension_numbers<[1], [0], [0], [1], [0, 0, 1, 1], [], []>} : vector<8x10xf32>, vector<10x4xf32>, vector<8x4xf32> -> vector<8x4xf32>
    %c0_3 = arith.constant 0 : index
    %c0_4 = arith.constant 0 : index
    %3 = vector.load %arg3[%c0_3, %c0_4] : memref<1x4xf32, #tpu.memory_space<vmem>>, vector<1x4xf32>
    %4 = vector.broadcast %3 : vector<1x4xf32> to vector<8x4xf32>
    %5 = arith.addf %2, %4 : vector<8x4xf32>
    %c0_5 = arith.constant 0 : index
    %c0_6 = arith.constant 0 : index
    %6 = vector.load %arg4[%c0_5, %c0_6] : memref<8x4xf32, #tpu.memory_space<vmem>>, vector<8x4xf32>
    tpu.vector_store %arg4[%c0_5, %c0_6], %5 {strides = array<i32>} : memref<8x4xf32, #tpu.memory_space<vmem>>, vector<8x4xf32>,
    return
  }
  func.func @transform_0(%arg0: i32) -> (i32, i32) {
    %c0_i32 = arith.constant 0 : i32
    %c0_i32_0 = arith.constant 0 : i32
    return %arg0, %c0_i32 : i32, i32
  }
  func.func @transform_1(%arg0: i32) -> (i32, i32) {
    %c0_i32 = arith.constant 0 : i32
    %c0_i32_0 = arith.constant 0 : i32
    %c0_i32_1 = arith.constant 0 : i32
    return %c0_i32, %c0_i32_0 : i32, i32
  }
  func.func @transform_2(%arg0: i32) -> (i32, i32) {
    %c0_i32 = arith.constant 0 : i32
    %c0_i32_0 = arith.constant 0 : i32
    %c0_i32_1 = arith.constant 0 : i32
    return %c0_i32, %c0_i32_0 : i32, i32
  }
  func.func @transform_3(%arg0: i32) -> (i32, i32) {
    %c0_i32 = arith.constant 0 : i32
    %c0_i32_0 = arith.constant 0 : i32
    return %arg0, %c0_i32 : i32, i32
  }
}

</mosaic_0001>

<llo_original>
// kernel: net_forward_fused.1
$region0: #{net_forward_fused.1}
  #allocation0 [shape = 'u32[]', space=smem, size = 0x4, offset = 0x4, fixed_abs, tag = 'smem constant byte address 0x4 - core index']
  #allocation1 [shape = 'u32[144,128]{1,0:T(1,128)}', space=vmem, size = 0x12000, scoped, tag = 'internal scratch']
  %s0 = inlined_call_operand.vmem [shape: f32[8,10], index: 0, kind: input, shape index: {}]
  %s1 = inlined_call_operand.vmem [shape: f32[10,4], index: 1, kind: input, shape index: {}]
  %s2 = inlined_call_operand.vmem [shape: f32[1,4], index: 2, kind: input, shape index: {}]
  %s3 = inlined_call_operand.vmem [shape: f32[8,4], index: 3, kind: output, shape index: {}]
  %s4 = sld [smem:[#allocation0]]
  $region22: #{net_forward_fused.1} parent=0
    _
  %s6 = ssub.s32 1, %s4
  %s7 = scalar_select 0, %s6, %s4
  // Predicated region
  $region2: #{net_forward_fused.1} parent=0 // pred_check
    _
  $region3: #{net_forward_fused.1} parent=0 // pred_check_branch
    %9 = sbr.rel (0) target = $region5
  $region4: #{net_forward_fused.1} parent=0 // pred_region
    _
  $region5: #{net_forward_fused.1} parent=0 // pred_fallthru
    _
  // Predicated region
  $region6: #{net_forward_fused.1} parent=0 // pred_check
    _
  $region7: #{net_forward_fused.1} parent=0 // pred_check_branch
    %11 = sbr.rel (0) target = $region9
  $region8: #{net_forward_fused.1} parent=0 // pred_region
    _
  $region9: #{net_forward_fused.1} parent=0 // pred_fallthru
    _
  // Predicated region
  $region10: #{net_forward_fused.1} parent=0 // pred_check
    _
  $region11: #{net_forward_fused.1} parent=0 // pred_check_branch
    %13 = sbr.rel (0) target = $region13
  $region12: #{net_forward_fused.1} parent=0 // pred_region
    _
  $region13: #{net_forward_fused.1} parent=0 // pred_fallthru
    _
  %v14 = vld [vmem:[%s0] sm:$0xff]
  %v15 = vld [vmem:[%s1] sm:$0xff]
  %v16 = vld [vmem:[%s1 + $0x8] sm:$0x3]
  %v17 = vld [vmem:[%s2] sm:$0x1]
  %v19 = vlaneseq
  %v20 = vshrl.u32 %v19, 7
  %v21 = vsub.s32 0, %v20
  %v22 = vrot.slane %v17, %v21
  %vm24 = vcmask 80896
  %v26 = vsel %vm24, %v14, 0
  %vm28 = vcmask 1041408
  %v30 = vsel %vm28, %v16, 0
  %32 = vmatprep.subr.mxu0 0.0
  %33 = vmatpush1.msra.mxu0 0.0
  %34 = vmatprep.subr.mxu0 0.0
  %35 = vmatpush1.msra.mxu0 0.0
  %36 = vmatprep.subr.mxu0 0.0
  %37 = vmatpush1.msra.mxu0 0.0
  %38 = vmatprep.subr.mxu0 0.0
  %39 = vmatpush1.msra.mxu0 0.0
  %40 = vmatprep.subr.mxu0 0.0
  %41 = vmatpush1.msra.mxu0 0.0
  %42 = vmatprep.subr.mxu0 0.0
  %43 = vmatpush1.msra.mxu0 0.0
  %44 = vmatprep.subr.mxu0 0.0
  %45 = vmatpush1.msra.mxu0 0.0
  %46 = vmatprep.subr.mxu0 0.0
  %47 = vmatpush1.msra.mxu0 0.0
  %48 = vmatprep.subr.mxu0 0.0
  %49 = vmatpush1.msra.mxu0 0.0
  %50 = vmatprep.subr.mxu0 0.0
  %51 = vmatpush1.msra.mxu0 0.0
  %52 = vmatprep.subr.mxu0 0.0
  %53 = vmatpush1.msra.mxu0 0.0
  %54 = vmatprep.subr.mxu0 0.0
  %55 = vmatpush1.msra.mxu0 0.0
  %56 = vmatprep.subr.mxu0 0.0
  %57 = vmatpush1.msra.mxu0 0.0
  %58 = vmatprep.subr.mxu0 0.0
  %59 = vmatpush1.msra.mxu0 0.0
  %60 = vmatprep.subr.mxu0 0.0
  %61 = vmatpush1.msra.mxu0 %v30
  %62 = vmatprep.subr.mxu0 0.0
  %63 = vmatpush1.msra.mxu0 %v15
  %64 = vmatprep.subr.mxu0 0.0
  %65 = vmatpush2.msra.mxu0 0.0
  %66 = vmatprep.subr.mxu0 0.0
  %67 = vmatpush2.msra.mxu0 0.0
  %68 = vmatprep.subr.mxu0 0.0
  %69 = vmatpush2.msra.mxu0 0.0
  %70 = vmatprep.subr.mxu0 0.0
  %71 = vmatpush2.msra.mxu0 0.0
  %72 = vmatprep.subr.mxu0 0.0
  %73 = vmatpush2.msra.mxu0 0.0
  %74 = vmatprep.subr.mxu0 0.0
  %75 = vmatpush2.msra.mxu0 0.0
  %76 = vmatprep.subr.mxu0 0.0
  %77 = vmatpush2.msra.mxu0 0.0
  %78 = vmatprep.subr.mxu0 0.0
  %79 = vmatpush2.msra.mxu0 0.0
  %80 = vmatprep.subr.mxu0 0.0
  %81 = vmatpush2.msra.mxu0 0.0
  %82 = vmatprep.subr.mxu0 0.0
  %83 = vmatpush2.msra.mxu0 0.0
  %84 = vmatprep.subr.mxu0 0.0
  %85 = vmatpush2.msra.mxu0 0.0
  %86 = vmatprep.subr.mxu0 0.0
  %87 = vmatpush2.msra.mxu0 0.0
  %88 = vmatprep.subr.mxu0 0.0
  %89 = vmatpush2.msra.mxu0 0.0
  %90 = vmatprep.subr.mxu0 0.0
  %91 = vmatpush2.msra.mxu0 0.0
  %92 = vmatprep.subr.mxu0 0.0
  %93 = vmatpush2.msra.mxu0 0.0
  %94 = vmatprep.subr.mxu0 0.0
  %95 = vmatpush2.msra.mxu0 0.0
  %96 = vmatprep.mubr.f32.mxu0 0.0
  %97 = vmatmul.mubr.f32.gmra.mxu0 %v26
  %v98 = vpop.f32.mrf.mxu0
  %v99 = vadd.f32 %v22, %v98
  %v100 = vpop.f32.mrf.mxu0
  %101 = vdwg.mxu0
  %vm102 = vcmask 31744
  %103 = vst.msk [vmem:[%s3] sm:$0xff] %vm102, %v99
  // Predicated region
  $region14: #{net_forward_fused.1} parent=0 // pred_check
    _
  $region15: #{net_forward_fused.1} parent=0 // pred_check_branch
    %105 = sbr.rel (0) target = $region17
  $region16: #{net_forward_fused.1} parent=0 // pred_region
    _
  $region17: #{net_forward_fused.1} parent=0 // pred_fallthru
    _
  // Predicated region
  $region18: #{net_forward_fused.1} parent=0 // pred_check
    _
  $region19: #{net_forward_fused.1} parent=0 // pred_check_branch
    %107 = sbr.rel (0) target = $region21
  $region20: #{net_forward_fused.1} parent=0 // pred_region
    _
  $region21: #{net_forward_fused.1} parent=0 // pred_fallthru
    _

</llo_original>
